<compile_context>
chip_gen: v6e
topology: v6e:2x2x1
jax: 0.10.0
libtpu: 0.0.40
codegen_flags: <defaults>
</compile_context>

<pallas_src>
import jax
import jax.numpy as jnp
from jax.experimental import pallas as pl
from jax.experimental.pallas import tpu as pltpu


def _temp_softmax_kernel(temp_ref, out_ref):
    # temp_ref: (1, K) lane-major — the K=4 values live along the lane axis,
    # so max/sum are in-lane-axis reductions and the store is a single masked
    # row store.  Exact divide: nothing here is EUP-bound, and exact numerics
    # keep sum(softmax) == 1 to f32 roundoff.
    t = temp_ref[...].astype(jnp.float32)            # (1, K)
    t_max = jnp.max(t, axis=-1, keepdims=True)       # (1, 1)
    e = jnp.exp(t - t_max)                           # (1, K)
    denom = jnp.sum(e, axis=-1, keepdims=True)       # (1, 1)
    out_ref[...] = (e / denom).astype(out_ref.dtype)


def temp_softmax(temp):
    """softmax(temp, dim=0) for the (4, 1) parameter, as a Pallas kernel.

    The parameter is presented to the kernel lane-major as (1, 4) and the
    result is reshaped back to the parameter's shape.  (For standalone use,
    plain jax.nn.softmax is just as fast — this kernel exists so the compute
    is available in Pallas form, e.g. for later fusion.)
    """
    k = temp.size
    t2 = temp.reshape(1, k)
    out = pl.pallas_call(
        _temp_softmax_kernel,
        out_shape=jax.ShapeDtypeStruct((1, k), temp.dtype),
        in_specs=[pl.BlockSpec(memory_space=pltpu.MemorySpace.VMEM)],
        out_specs=pl.BlockSpec(memory_space=pltpu.MemorySpace.VMEM),
    )(t2)
    return out.reshape(temp.shape)


def model_weight_forward(temp, graph_adj, weight_id=None):
    """Mirrors model_weight.forward(graph_adj, weight_id) -> graph_adj.

    The reference forward computes softmax(temp) and discards it, then returns
    graph_adj unchanged.  We return the input leaf untouched (no astype, no
    reshape) so under jit this lowers to input/output aliasing — zero copies,
    zero kernel launches on every TPU generation.
    """
    del temp, weight_id  # softmax result is discarded by the reference forward
    return graph_adj


def init_params(key):
    # torch.nn.init.uniform_(self.temp, a=0.0, b=3) on a (4, 1) parameter.
    return jax.random.uniform(
        key, (4, 1), dtype=jnp.float32, minval=0.0, maxval=3.0
    )


if __name__ == "__main__":
    key = jax.random.PRNGKey(0)
    k_temp, k_adj, k_wid = jax.random.split(key, 3)

    temp = init_params(k_temp)                                    # (4, 1) param
    graph_adj = jax.random.uniform(k_adj, (16, 16), jnp.float32)  # small adjacency
    weight_id = jax.random.randint(k_wid, (16,), 0, 4)            # unused, like torch

    # --- run the Pallas softmax kernel once (the module's only real compute) ---
    sm = jax.block_until_ready(temp_softmax(temp))
    sm_ref = jax.nn.softmax(temp, axis=0)
    assert sm.shape == temp.shape and sm.dtype == temp.dtype
    assert bool(jnp.allclose(sm, sm_ref, atol=1e-6, rtol=1e-5))
    assert bool(jnp.allclose(jnp.sum(sm), 1.0, atol=1e-5))

    # --- forward: identity on graph_adj, no kernel / no HBM round trip ---
    out = jax.block_until_ready(model_weight_forward(temp, graph_adj, weight_id))
    assert out.shape == graph_adj.shape and out.dtype == graph_adj.dtype
    assert bool(jnp.all(out == graph_adj))

    print("KERNEL_OK")
</pallas_src>

<mosaic_0001>
module attributes {stable_mosaic.version = 11 : i64} {
  func.func @_temp_softmax_kernel(%arg0: memref<1x4xf32, #tpu.memory_space<vmem>>, %arg1: memref<1x4xf32, #tpu.memory_space<vmem>>) attributes {dimension_semantics = [], scalar_prefetch = 0 : i64, scratch_operands = 0 : i64, tpu.core_type = #tpu.core_type<tc>} {
    %c0 = arith.constant 0 : index
    %c0_0 = arith.constant 0 : index
    %0 = vector.load %arg0[%c0, %c0_0] : memref<1x4xf32, #tpu.memory_space<vmem>>, vector<1x4xf32>
    %cst = arith.constant dense<0xFF800000> : vector<1xf32>
    %1 = vector.multi_reduction <maximumf>, %0, %cst [1] : vector<1x4xf32> to vector<1xf32>
    %2 = vector.shape_cast %1 : vector<1xf32> to vector<1x1xf32>
    %3 = vector.broadcast %2 : vector<1x1xf32> to vector<1x4xf32>
    %4 = arith.subf %0, %3 : vector<1x4xf32>
    %5 = math.exp %4 : vector<1x4xf32>
    %cst_1 = arith.constant dense<0.000000e+00> : vector<1xf32>
    %6 = vector.multi_reduction <add>, %5, %cst_1 [1] : vector<1x4xf32> to vector<1xf32>
    %7 = vector.shape_cast %6 : vector<1xf32> to vector<1x1xf32>
    %8 = vector.broadcast %7 : vector<1x1xf32> to vector<1x4xf32>
    %9 = arith.divf %5, %8 : vector<1x4xf32>
    %c0_2 = arith.constant 0 : index
    %c0_3 = arith.constant 0 : index
    %10 = vector.load %arg1[%c0_2, %c0_3] : memref<1x4xf32, #tpu.memory_space<vmem>>, vector<1x4xf32>
    tpu.vector_store %arg1[%c0_2, %c0_3], %9 {strides = array<i32>} : memref<1x4xf32, #tpu.memory_space<vmem>>, vector<1x4xf32>,
    return
  }
}

</mosaic_0001>

<llo_original>
// kernel: tpu_custom_call.1
$region0: #{tpu_custom_call.1}
  #allocation0 [shape = 'u32[]', space=smem, size = 0x4, offset = 0x4, fixed_abs, tag = 'smem constant byte address 0x4 - core index']
  #allocation1 [shape = 'u32[144,128]{1,0:T(1,128)}', space=vmem, size = 0x12000, scoped, tag = 'internal scratch']
  %s0 = inlined_call_operand.hbm [shape: f32[1,4], index: 0, kind: input, shape index: {}]
  %s1 = inlined_call_operand.hbm [shape: f32[1,4], index: 1, kind: output, shape index: {}]
  %s2 = sld [smem:[#allocation0]]
  $region18: #{tpu_custom_call.1} parent=0
    _
  %s4 = ssub.s32 1, %s2
  %s5 = scalar_select 0, %s4, %s2
  $region1: #{tpu_custom_call.1} parent=0
    #allocation2 [shape = 'u8[512]{0}', space=vmem, size = 0x400, scoped, tag = 'input window, operand 0, single buffered']
    #allocation3 [shape = 's32[1]{0}', space=sflag, size = 0x4, scoped, tag = 'scoped memory for tpu_custom_call.1']
    #allocation4 [shape = 's32[1]{0}', space=sflag, size = 0x4, scoped, tag = 'scoped memory for tpu_custom_call.1']
    #allocation5 [shape = 'u8[512]{0}', space=vmem, size = 0x400, scoped, tag = 'output window, operand 0, single buffered']
    %6 = vsyncpa [#allocation3], 0
    %7 = vsyncpa [#allocation4], 0
    // Predicated region
    $region2: #{tpu_custom_call.1} parent=1 // pred_check
      _
    $region3: #{tpu_custom_call.1} parent=1 // pred_check_branch
      %9 = sbr.rel (0) target = $region5
    $region4: #{tpu_custom_call.1} parent=1 // pred_region
      %s11 = ssub.s32 16, 16
      %12 = vsyncadd [#allocation3], %s11
      %s14 = sshll.u32 [#allocation2], 4
      %s15 = int_to_ptr.vmem [resolvable:$true] %s14
      %17 = dma.hbm_to_vmem [thread:$0]  %s0, 16, %s15, [#allocation3]
    $region5: #{tpu_custom_call.1} parent=1 // pred_fallthru
      _
    // Predicated region
    $region6: #{tpu_custom_call.1} parent=1 // pred_check
      _
    $region7: #{tpu_custom_call.1} parent=1 // pred_check_branch
      %19 = sbr.rel (0) target = $region9
    $region8: #{tpu_custom_call.1} parent=1 // pred_region
      %20 = dma.done [#allocation3], 16
    $region9: #{tpu_custom_call.1} parent=1 // pred_fallthru
      _
    %v21 = vld [vmem:[#allocation2] sm:$0x1]
    %vm22 = vcmask 24576
    %v23 = vsel %vm22, %v21, -inf
    %24 = vmax.xlane.f32.xlu0 %v23
    %v25 = vpop.xlane.xlu0 %24
    %v26 = vsub.f32 %v21, %v25
    %v27 = vmul.f32 %v26, 1.442695
    %v28 = vpow.pop %v27
    %v29 = vsel %vm22, %v28, 0.0
    %30 = vadd.xlane.f32.xlu0 %v29
    %v31 = vpop.xlane.xlu0 %30
    %v32 = vrcp.pop %v31
    %v33 = vmul.f32 %v28, %v32
    %34 = vst.msk [vmem:[#allocation5] sm:$0x1] %vm22, %v33
    // Predicated region
    $region10: #{tpu_custom_call.1} parent=1 // pred_check
      _
    $region11: #{tpu_custom_call.1} parent=1 // pred_check_branch
      %36 = sbr.rel (0) target = $region13
    $region12: #{tpu_custom_call.1} parent=1 // pred_region
      %s38 = ssub.s32 16, 16
      %39 = vsyncadd [#allocation4], %s38
      %s41 = sshll.u32 [#allocation5], 4
      %s42 = int_to_ptr.vmem [resolvable:$true] %s41
      %44 = dma.vmem_to_hbm [thread:$0]  %s42, 16, %s1, [#allocation4]
    $region13: #{tpu_custom_call.1} parent=1 // pred_fallthru
      _
    // Predicated region
    $region14: #{tpu_custom_call.1} parent=1 // pred_check
      _
    $region15: #{tpu_custom_call.1} parent=1 // pred_check_branch
      %46 = sbr.rel (0) target = $region17
    $region16: #{tpu_custom_call.1} parent=1 // pred_region
      %47 = dma.done [#allocation4], 16
    $region17: #{tpu_custom_call.1} parent=1 // pred_fallthru
      _
    %48 = vsyncpa [#allocation3], 1
    %49 = vsyncpa [#allocation4], 1

</llo_original>
